<compile_context>
chip_gen: v7x
topology: tpu7x:2x2x1
jax: 0.10.0
libtpu: 0.0.40
codegen_flags: <defaults>
</compile_context>

<pallas_src>
import jax
import jax.numpy as jnp
from jax.experimental import pallas as pl
from jax.experimental.pallas import tpu as pltpu


_TARGET_LANE_TILE = 2048              # preferred lane extent per block (multiple of 128)
_TARGET_SLAB_BYTES = 2 * 1024 * 1024  # budget for one (tr, L) slab (~2 MiB)


def _sublane(dtype):
    """Sublane tile for the dtype (f32: 8, bf16: 16, int8/fp8: 32)."""
    return {4: 8, 2: 16, 1: 32}.get(jnp.dtype(dtype).itemsize, 8)


def _choose_lane_width(hw):
    """Lane extent L of the reshaped view.

    - Ragged hw (hw % 128 != 0): keep L = hw (full-dim exemption) -> no host
      pad, no output crop, correctness via masked tail stores only.
    - hw a multiple of 128: largest 128-multiple divisor of hw that is
      <= _TARGET_LANE_TILE, so every store is a full-width, unmasked vst and
      the leftover factor R = hw // L is folded into the row (sublane) axis.
    """
    if hw % 128 != 0 or hw <= _TARGET_LANE_TILE:
        return hw
    lane = _TARGET_LANE_TILE
    while lane >= 128:
        if hw % lane == 0:
            return lane
        lane -= 128
    return hw  # unreachable: 128 divides hw


def _choose_row_tile(rows, lane_bytes, sublane):
    """Row (sublane-axis) tile: a multiple of the dtype sublane count that
    divides `rows`, keeping one (tr, L) slab around _TARGET_SLAB_BYTES.
    Falls back to the full row extent (full-dim exemption)."""
    if rows * lane_bytes <= _TARGET_SLAB_BYTES:
        return rows
    tr = max(sublane, (_TARGET_SLAB_BYTES // lane_bytes) // sublane * sublane)
    while tr >= sublane:
        if rows % tr == 0:
            return tr
        tr -= sublane
    # TODO(synk): rows with no sublane-multiple divisor fall back to the full
    # extent; vmem_limit_bytes below is sized from the actual block so this
    # still compiles for realistic shapes.
    return rows


def _simple_gate_kernel(x_ref, o_ref):
    # x_ref: (2, tr, L) -- both channel halves arrive in one fused DMA.
    o_ref[...] = x_ref[0] * x_ref[1]


def simple_gate(x):
    """SimpleGate with dim=1 (channel chunk) for NCHW input."""
    n, c, h, w = x.shape
    assert c % 2 == 0, "channel dim must be even for chunk(2, dim=1)"
    c_half = c // 2
    hw = h * w
    itemsize = jnp.dtype(x.dtype).itemsize
    sublane = _sublane(x.dtype)

    # (N, C, H, W) -> (N, 2, rows, L): pure view, no data movement.
    lane = _choose_lane_width(hw)
    rows = c_half * (hw // lane)
    x_r = x.reshape(n, 2, rows, lane)

    tr = _choose_row_tile(rows, lane * itemsize, sublane)
    grid = (n, rows // tr)

    # VMEM sizing: fused input block (2, tr, L) + output block (tr, L),
    # double-buffered by the pipeliner.
    slab_bytes = tr * lane * itemsize
    vmem_needed = 2 * (2 * slab_bytes + slab_bytes)
    vmem_limit = int(max(32 * 1024 * 1024, vmem_needed + (4 << 20)))

    out = pl.pallas_call(
        _simple_gate_kernel,
        out_shape=jax.ShapeDtypeStruct((n, rows, lane), x.dtype),
        grid_spec=pltpu.PrefetchScalarGridSpec(
            num_scalar_prefetch=0,
            grid=grid,
            in_specs=[
                # Single fused spec: block (2, tr, L) pulls both channel
                # halves with one strided DMA per grid step.
                pl.BlockSpec((None, 2, tr, lane), lambda i, j: (i, 0, j, 0)),
            ],
            out_specs=pl.BlockSpec((None, tr, lane), lambda i, j: (i, j, 0)),
        ),
        compiler_params=pltpu.CompilerParams(
            dimension_semantics=("parallel", "parallel"),
            vmem_limit_bytes=vmem_limit,
        ),
    )(x_r)

    return out.reshape(n, c_half, h, w)


def _reference(x):
    x1, x2 = jnp.split(x, 2, axis=1)
    return x1 * x2


if __name__ == "__main__":
    key = jax.random.PRNGKey(0)

    # Primary check: small NCHW shape consistent with the module.
    x = jax.random.normal(key, (2, 4, 16, 16), dtype=jnp.float32)
    y = simple_gate(x)
    jax.block_until_ready(y)
    ref = _reference(x)
    assert y.shape == ref.shape
    assert jnp.allclose(y, ref, atol=1e-6, rtol=1e-6)

    # Ragged-H*W check (exercises the no-pad / full-dim-exemption path).
    x2 = jax.random.normal(jax.random.PRNGKey(1), (2, 8, 7, 9), dtype=jnp.float32)
    y2 = simple_gate(x2)
    jax.block_until_ready(y2)
    ref2 = _reference(x2)
    assert y2.shape == ref2.shape
    assert jnp.allclose(y2, ref2, atol=1e-6, rtol=1e-6)

    print("KERNEL_OK")
</pallas_src>

<mosaic_0001>
module attributes {stable_mosaic.version = 11 : i64} {
  func.func @_simple_gate_kernel(%arg0: i32, %arg1: i32, %arg2: memref<1x2x2x256xf32, #tpu.memory_space<vmem>>, %arg3: memref<1x2x256xf32, #tpu.memory_space<vmem>>) attributes {dimension_semantics = [#tpu.dimension_semantics<parallel>, #tpu.dimension_semantics<parallel>], iteration_bounds = array<i64: 2, 1>, scalar_prefetch = 0 : i64, scratch_operands = 0 : i64, tpu.core_type = #tpu.core_type<tc>, window_params = [{transform_indices = @transform_0, window_bounds = array<i64: 1, 2, 2, 256>}, {transform_indices = @transform_1, window_bounds = array<i64: 1, 2, 256>}]} {
    %c0 = arith.constant 0 : index
    %c0_0 = arith.constant 0 : index
    %c0_1 = arith.constant 0 : index
    %c0_2 = arith.constant 0 : index
    %0 = vector.load %arg2[%c0, %c0_0, %c0_1, %c0_2] : memref<1x2x2x256xf32, #tpu.memory_space<vmem>>, vector<1x1x2x256xf32>
    %1 = vector.shape_cast %0 : vector<1x1x2x256xf32> to vector<2x256xf32>
    %c0_3 = arith.constant 0 : index
    %c1 = arith.constant 1 : index
    %c0_4 = arith.constant 0 : index
    %c0_5 = arith.constant 0 : index
    %2 = vector.load %arg2[%c0_3, %c1, %c0_4, %c0_5] : memref<1x2x2x256xf32, #tpu.memory_space<vmem>>, vector<1x1x2x256xf32>
    %3 = vector.shape_cast %2 : vector<1x1x2x256xf32> to vector<2x256xf32>
    %4 = arith.mulf %1, %3 : vector<2x256xf32>
    %c0_6 = arith.constant 0 : index
    %c0_7 = arith.constant 0 : index
    %c0_8 = arith.constant 0 : index
    %5 = vector.load %arg3[%c0_6, %c0_7, %c0_8] : memref<1x2x256xf32, #tpu.memory_space<vmem>>, vector<1x2x256xf32>
    %6 = vector.shape_cast %5 : vector<1x2x256xf32> to vector<2x256xf32>
    %7 = vector.shape_cast %4 : vector<2x256xf32> to vector<1x2x256xf32>
    tpu.vector_store %arg3[%c0_6, %c0_7, %c0_8], %7 {strides = array<i32>} : memref<1x2x256xf32, #tpu.memory_space<vmem>>, vector<1x2x256xf32>,
    return
  }
  func.func @transform_0(%arg0: i32, %arg1: i32) -> (i32, i32, i32, i32) {
    %c0_i32 = arith.constant 0 : i32
    %c0_i32_0 = arith.constant 0 : i32
    %c0_i32_1 = arith.constant 0 : i32
    return %arg0, %c0_i32, %arg1, %c0_i32_0 : i32, i32, i32, i32
  }
  func.func @transform_1(%arg0: i32, %arg1: i32) -> (i32, i32, i32) {
    %c0_i32 = arith.constant 0 : i32
    %c0_i32_0 = arith.constant 0 : i32
    return %arg0, %arg1, %c0_i32 : i32, i32, i32
  }
}

</mosaic_0001>

<llo_original>
// kernel: tpu_custom_call.1
$region0: #{tpu_custom_call.1}
  #allocation0 [shape = 'u32[]', space=smem, size = 0x4, offset = 0x4, fixed_abs, tag = 'smem constant byte address 0x4 - core index']
  #allocation1 [shape = 'u32[144,128]{1,0:T(1,128)}', space=vmem, size = 0x12000, scoped, tag = 'internal scratch']
  %s0 = inlined_call_operand.hbm [shape: f32[2,2,2,256], index: 0, kind: input, shape index: {}]
  %s1 = inlined_call_operand.hbm [shape: f32[2,2,256], index: 1, kind: output, shape index: {}]
  %s2 = sld [smem:[#allocation0]]
  $region41: #{tpu_custom_call.1} parent=0
    _
  %s4 = ssub.s32 1, %s2
  %s5 = scalar_select 0, %s4, %s2
  $region1: #{tpu_custom_call.1} parent=0
    #allocation2 [shape = 'u8[8192]{0}', space=vmem, size = 0x2000, scoped, tag = 'input window, operand 0']
    #allocation3 [shape = 's32[2]{0}', space=sflag, size = 0x8, scoped, tag = 'scoped memory for tpu_custom_call.1']
    #allocation4 [shape = 's32[2]{0}', space=sflag, size = 0x8, scoped, tag = 'scoped memory for tpu_custom_call.1']
    #allocation5 [shape = 'u8[4096]{0}', space=vmem, size = 0x1000, scoped, tag = 'output window, operand 0']
    %6 = vsyncpa [#allocation3], 0
    %s7 = scalar_lea.sflag [#allocation3], 1
    %8 = vsyncpa %s7, 0
    %9 = vsyncpa [#allocation4], 0
    %s10 = scalar_lea.sflag [#allocation4], 1
    %11 = vsyncpa %s10, 0
    loop: start=0, step=1, limit=4
    $region2: #{tpu_custom_call.1} parent=1 // loop_pre_header
      _
    $region3: #{tpu_custom_call.1} parent=1 // loop_header
      %s13 = sphi 0, %s17
      %p14 = scmp.ge.s32.totalorder %s13, 4
      %s20 = sphi 0, %s32
      %s21 = sphi 0, %s28
      %s22 = sphi 0, %s20
      %s23 = sphi 0, %s21
      %s24 = sphi 0, %s22
      %s25 = sphi 0, %s23
      %s37 = sphi 0, %s39
      %s40 = sphi 0, %s37
      %s41 = sphi 0, %s40
      %s57 = sphi 0, %s41
      %s65 = sphi 0, %s67
      %s68 = sphi 0, %s65
      %s69 = sphi 0, %s68
      %s85 = sphi 0, %s69
    $region4: #{tpu_custom_call.1} parent=1 // loop_header_branch
      %16 = sbr.rel (%p14) target = $region8
    $region5: #{tpu_custom_call.1} parent=1 // loop_body
      %s18 = ssub.s32 %s13, 1
      %s19 = ssub.s32 %s13, 2
      %s26 = sadd.s32 1, %s21
      %p27 = scmp.ge.s32.totalorder %s26, 1
      %s28 = scalar_select %p27, 0, %s26
      %s29 = sadd.s32 1, %s20
      %s30 = scalar_select %p27, %s29, %s20
      %p31 = scmp.ge.s32.totalorder %s30, 2
      %s32 = scalar_select %p31, 0, %s30
      %s33 = ssub.s32 %s20, %s32
      %s34 = ssub.s32 %s21, %s28
      %s35 = sor.u32 %s33, %s34
      %p36 = scmp.eq.s32.totalorder %s35, 0
      %s38 = sadd.s32 %s37, 1
      %s39 = scalar_select %p36, %s37, %s38
      %p42 = pneg %p36
      %p43 = scmp.eq.s32.totalorder %s13, 1
      %p44 = por %p42, %p43
      %p45 = scmp.ne.s32.totalorder %s37, %s40
      %p46 = scmp.eq.s32.totalorder %s13, 0
      %p47 = por %p45, %p46
      %p48 = scmp.ne.s32.totalorder %s37, %s40
      %p49 = scmp.eq.s32.totalorder %s18, 1
      %p50 = por %p48, %p49
      %p51 = scmp.ne.s32.totalorder %s40, %s41
      %p52 = scmp.eq.s32.totalorder %s18, 0
      %p53 = por %p51, %p52
      %p54 = scmp.ne.s32.totalorder %s40, %s41
      %p55 = scmp.eq.s32.totalorder %s19, 1
      %p56 = por %p54, %p55
      %p58 = scmp.ne.s32.totalorder %s41, %s57
      %p59 = scmp.eq.s32.totalorder %s19, 0
      %p60 = por %p58, %p59
      %s61 = ssub.s32 %s20, %s32
      %s62 = ssub.s32 %s21, %s28
      %s63 = sor.u32 %s61, %s62
      %p64 = scmp.eq.s32.totalorder %s63, 0
      %s66 = sadd.s32 %s65, 1
      %s67 = scalar_select %p64, %s65, %s66
      %p70 = pneg %p64
      %p71 = scmp.eq.s32.totalorder %s13, 1
      %p72 = por %p70, %p71
      %p73 = scmp.ne.s32.totalorder %s65, %s68
      %p74 = scmp.eq.s32.totalorder %s13, 0
      %p75 = por %p73, %p74
      %p76 = scmp.ne.s32.totalorder %s65, %s68
      %p77 = scmp.eq.s32.totalorder %s18, 1
      %p78 = por %p76, %p77
      %p79 = scmp.ne.s32.totalorder %s68, %s69
      %p80 = scmp.eq.s32.totalorder %s18, 0
      %p81 = por %p79, %p80
      %p82 = scmp.ne.s32.totalorder %s68, %s69
      %p83 = scmp.eq.s32.totalorder %s19, 1
      %p84 = por %p82, %p83
      %p86 = scmp.ne.s32.totalorder %s69, %s85
      %p87 = scmp.eq.s32.totalorder %s19, 0
      %p88 = por %p86, %p87
      %p89 = scmp.le.s32.totalorder 1, %s13
      %p90 = scmp.lt.s32.totalorder %s13, 3
      %p91 = pnand %p89, %p90
      %p92 = pneg %p91
      // Predicated region
      $region9: #{tpu_custom_call.1} parent=5 // pred_check
        _
      $region10: #{tpu_custom_call.1} parent=5 // pred_check_branch
        %94 = sbr.rel (%p91) target = $region12
      $region11: #{tpu_custom_call.1} parent=5 // pred_region
        %s95 = ssub.s32 %s13, 1
      $region12: #{tpu_custom_call.1} parent=5 // pred_fallthru
        _
      %p96 = scmp.lt.s32.totalorder %s13, 2
      // Predicated region
      $region13: #{tpu_custom_call.1} parent=5 // pred_check
        %p97 = pneg %p96
      $region14: #{tpu_custom_call.1} parent=5 // pred_check_branch
        %99 = sbr.rel (%p97) target = $region16
      $region15: #{tpu_custom_call.1} parent=5 // pred_region
        // Predicated region
        $region17: #{tpu_custom_call.1} parent=15 // pred_check
          %p100 = pneg %p47
        $region18: #{tpu_custom_call.1} parent=15 // pred_check_branch
          %102 = sbr.rel (%p100) target = $region20
        $region19: #{tpu_custom_call.1} parent=15 // pred_region
          %s103 = sand.u32 %s37, 1
          %s104 = scalar_lea.sflag [#allocation3], %s103
          %s105 = sand.u32 %s37, 1
          %s106 = smul.addr %s105, 8
          %s107 = scalar_lea.vmem [#allocation2], %s106
          %s109 = ssub.s32 128, 128
          %110 = vsyncadd %s104, %s109
          %s111 = smul.addr %s21, 2
          %s112 = smul.addr %s20, 4
          %s113 = sadd.s32 %s111, %s112
          %s114 = smul.addr %s113, 32
          %s115 = scalar_lea.hbm %s0, %s114
          %s116 = sshll.u32 %s107, 4
          %s117 = int_to_ptr.vmem [resolvable:$true] %s116
          %122 = dma.hbm_to_vmem [thread:$0]  %s115, 128, %s117, %s104, 64, 64, 4
        $region20: #{tpu_custom_call.1} parent=15 // pred_fallthru
          _
      $region16: #{tpu_custom_call.1} parent=5 // pred_fallthru
        _
      %p123 = scmp.le.s32.totalorder 1, %s13
      %p124 = scmp.lt.s32.totalorder %s13, 3
      %p125 = pnand %p123, %p124
      %p126 = pneg %p125
      // Predicated region
      $region21: #{tpu_custom_call.1} parent=5 // pred_check
        _
      $region22: #{tpu_custom_call.1} parent=5 // pred_check_branch
        %128 = sbr.rel (%p125) target = $region24
      $region23: #{tpu_custom_call.1} parent=5 // pred_region
        %s129 = ssub.s32 %s13, 1
        %s130 = sand.u32 %s40, 1
        %s131 = scalar_lea.sflag [#allocation3], %s130
        %s132 = sand.u32 %s40, 1
        %s133 = smul.addr %s132, 8
        %s134 = scalar_lea.vmem [#allocation2], %s133
        // Predicated region
        $region25: #{tpu_custom_call.1} parent=23 // pred_check
          %p135 = pneg %p53
        $region26: #{tpu_custom_call.1} parent=23 // pred_check_branch
          %137 = sbr.rel (%p135) target = $region28
        $region27: #{tpu_custom_call.1} parent=23 // pred_region
          %138 = dma.done %s131, 128
        $region28: #{tpu_custom_call.1} parent=23 // pred_fallthru
          _
        %s139 = sand.u32 %s40, 1
        %s140 = scalar_lea.sflag [#allocation3], %s139
        %s141 = sand.u32 %s40, 1
        %s142 = smul.addr %s141, 8
        %s143 = scalar_lea.vmem [#allocation2], %s142
        %p144 = pneg %p53
        %p145 = pneg %p50
        %p146 = pneg %p81
        %p147 = pneg %p78
        %s148 = sand.u32 %s68, 1
        %s149 = scalar_lea.sflag [#allocation4], %s148
        %s150 = sand.u32 %s68, 1
        %s151 = smul.addr %s150, 4
        %s152 = scalar_lea.vmem [#allocation5], %s151
        %v153 = vld [vmem:[%s134] sm:$0xf]
        %s154 = scalar_lea.vmem %s134, 4 [#allocation2]
        %v155 = vld [vmem:[%s154] sm:$0xf]
        %v156 = vmul.f32 %v153, %v155
        %157 = vst [vmem:[%s152] sm:$0xf] %v156
        %s158 = sand.u32 %s68, 1
        %s159 = scalar_lea.sflag [#allocation4], %s158
        %s160 = sand.u32 %s68, 1
        %s161 = smul.addr %s160, 4
        %s162 = scalar_lea.vmem [#allocation5], %s161
        // Predicated region
        $region29: #{tpu_custom_call.1} parent=23 // pred_check
          %p163 = pneg %p78
        $region30: #{tpu_custom_call.1} parent=23 // pred_check_branch
          %165 = sbr.rel (%p163) target = $region32
        $region31: #{tpu_custom_call.1} parent=23 // pred_region
          %s167 = ssub.s32 64, 64
          %168 = vsyncadd %s159, %s167
          %s169 = smul.addr %s23, 2
          %s170 = smul.addr %s22, 2
          %s171 = sadd.s32 %s169, %s170
          %s172 = smul.addr %s171, 32
          %s173 = scalar_lea.hbm %s1, %s172
          %s175 = sshll.u32 %s162, 4
          %s176 = int_to_ptr.vmem [resolvable:$true] %s175
          %178 = dma.vmem_to_hbm [thread:$0]  %s176, 64, %s173, %s159
        $region32: #{tpu_custom_call.1} parent=23 // pred_fallthru
          _
      $region24: #{tpu_custom_call.1} parent=5 // pred_fallthru
        _
      %p179 = scmp.le.s32.totalorder 2, %s13
      // Predicated region
      $region33: #{tpu_custom_call.1} parent=5 // pred_check
        %p180 = pneg %p179
      $region34: #{tpu_custom_call.1} parent=5 // pred_check_branch
        %182 = sbr.rel (%p180) target = $region36
      $region35: #{tpu_custom_call.1} parent=5 // pred_region
        %s183 = ssub.s32 %s13, 2
        // Predicated region
        $region37: #{tpu_custom_call.1} parent=35 // pred_check
          %p184 = pneg %p84
        $region38: #{tpu_custom_call.1} parent=35 // pred_check_branch
          %186 = sbr.rel (%p184) target = $region40
        $region39: #{tpu_custom_call.1} parent=35 // pred_region
          %s187 = sand.u32 %s69, 1
          %s188 = scalar_lea.sflag [#allocation4], %s187
          %s189 = sand.u32 %s69, 1
          %s190 = smul.addr %s189, 4
          %s191 = scalar_lea.vmem [#allocation5], %s190
          %192 = dma.done %s188, 64
        $region40: #{tpu_custom_call.1} parent=35 // pred_fallthru
          _
      $region36: #{tpu_custom_call.1} parent=5 // pred_fallthru
        _
    $region6: #{tpu_custom_call.1} parent=1 // loop_footer
      %s17 = sadd.s32 1, %s13
    $region7: #{tpu_custom_call.1} parent=1 // loop_footer_branch
      %12 = sbr.rel target = $region3
    $region8: #{tpu_custom_call.1} parent=1 // loop_exit
      _
    %193 = vsyncpa [#allocation3], 1
    %s194 = scalar_lea.sflag [#allocation3], 1
    %195 = vsyncpa %s194, 1
    %196 = vsyncpa [#allocation4], 1
    %s197 = scalar_lea.sflag [#allocation4], 1
    %198 = vsyncpa %s197, 1

</llo_original>
